<compile_context>
chip_gen: v7x
topology: tpu7x:2x2x1
jax: 0.10.0
libtpu: 0.0.40
codegen_flags: <defaults>
</compile_context>

<pallas_src>
import jax
import jax.numpy as jnp
from jax import lax
from jax.experimental import pallas as pl
from jax.experimental.pallas import tpu as pltpu


def _cdiv(a, b):
    return (a + b - 1) // b


def _round_up(n, m):
    return _cdiv(n, m) * m


def make_ann_kernel(n_chunks, chunk):
    """Kernel factory; n_chunks/chunk are static Python ints (lane chunking)."""

    def ann_kernel(xT_ref, w1_ref, b1_ref, w2_ref, b2_ref, w3_ref, b3_ref, oT_ref):
        # Hoist parameter loads out of the chunk loop (tiny, live in vregs).
        w1, b1 = w1_ref[...], b1_ref[...]
        w2, b2 = w2_ref[...], b2_ref[...]
        w3, b3 = w3_ref[...], b3_ref[...]

        def chunk_fn(c0):
            x = xT_ref[:, pl.ds(c0, chunk)]                       # (9, chunk)

            # layer 1: Linear(9, 16) + ReLU   (features on sublanes, batch on lanes)
            h = jnp.dot(w1, x, preferred_element_type=jnp.float32) + b1
            h = jnp.maximum(h, 0.0)                                # (16, chunk)
            # layer 2: Linear(16, 16) + ReLU
            h = jnp.dot(w2, h, preferred_element_type=jnp.float32) + b2
            h = jnp.maximum(h, 0.0)                                # (16, chunk)
            # layer 3: Linear(16, 9) + ReLU
            h = jnp.dot(w3, h, preferred_element_type=jnp.float32) + b3
            h = jnp.maximum(h, 0.0)                                # (9, chunk)

            # softmax over the feature axis (PyTorch dim=1) = sublane axis here.
            m = jnp.max(h, axis=0, keepdims=True)                  # (1, chunk)
            e = jnp.exp(h - m)
            denom = jnp.sum(e, axis=0, keepdims=True)              # (1, chunk)
            # Exact divide (not approx reciprocal): rows sum to 1 to f32 precision,
            # and the cost is hidden because the kernel is HBM-bound.
            oT_ref[:, pl.ds(c0, chunk)] = (e / denom).astype(oT_ref.dtype)

        if n_chunks == 1:
            chunk_fn(0)
        else:
            def body(c, carry):
                chunk_fn(pl.multiple_of(c * chunk, chunk))
                return carry
            # Modest unroll: gives the scheduler visibility without exploding code
            # size at 32K-lane tiles (n_chunks can be ~64).
            lax.fori_loop(0, n_chunks, body, 0, unroll=min(n_chunks, 4))

    return ann_kernel


def ann_forward_T(xT, params, *, tile_b=32768, chunk=512):
    """Feature-major forward: xT is (9, B) float; returns (9, B) softmax probs.

    tile_b=32768 keeps the double-buffered (9->16, tb) f32 in+out tiles under
    v5e's 16 MiB default scoped VMEM; v6e/v7x have headroom to spare.
    """
    f_in, B = xT.shape
    assert f_in == 9, f"expected 9 input features, got {f_in}"
    w1, b1, w2, b2, w3, b3 = (params[k] for k in ("w1", "b1", "w2", "b2", "w3", "b3"))

    # Lane-aligned batch, tile count, and chunking.
    lanes = _round_up(max(B, 1), 128)
    ntiles = _cdiv(lanes, min(tile_b, lanes))
    if ntiles == 1 and lanes >= 256:
        ntiles = 2                      # keep grid >= 2 so v7x's 2 TCs both get work
    ck = min(chunk, _round_up(_cdiv(lanes, ntiles), 128))   # in-kernel lane chunk
    tb = _round_up(_cdiv(lanes, ntiles), ck)                 # batch tile (mult of ck & 128)
    Bp = ntiles * tb
    n_chunks = tb // ck

    xTp = jnp.pad(xT.astype(jnp.float32), ((0, 0), (0, Bp - B)))

    const = lambda a: pl.BlockSpec(a.shape, lambda i: (0, 0))   # VMEM-resident params
    flops = 2 * Bp * (9 * 16 + 16 * 16 + 16 * 9)

    out_T = pl.pallas_call(
        make_ann_kernel(n_chunks, ck),
        out_shape=jax.ShapeDtypeStruct((9, Bp), jnp.float32),
        grid=(ntiles,),
        in_specs=[
            pl.BlockSpec((9, tb), lambda i: (0, i)),            # x^T tile (batch on lanes)
            const(w1), const(b1),
            const(w2), const(b2),
            const(w3), const(b3),
        ],
        out_specs=pl.BlockSpec((9, tb), lambda i: (0, i)),      # lane-dense output slab
        compiler_params=pltpu.CompilerParams(
            dimension_semantics=("parallel",),                  # 2x on v7x (2 TCs); no-op v5e/v6e
        ),
        cost_estimate=pl.CostEstimate(
            flops=flops,
            transcendentals=9 * Bp,
            bytes_accessed=(9 + 9) * 4 * Bp,
        ),
    )(xTp, w1, b1, w2, b2, w3, b3)

    return out_T[:, :B]


def ann_forward(x, params, **kw):
    """PyTorch-layout forward: x is (B, 9); returns (B, 9) softmax probs.

    NOTE: the two transposes below are full extra HBM round trips at large
    batch; large-batch callers should keep data feature-major and call
    ann_forward_T directly (layout plumbing only, same math).
    """
    out_T = ann_forward_T(jnp.transpose(x), params, **kw)
    return jnp.transpose(out_T)


def init_params(key):
    """Deterministic synthetic init matching nn.Linear shapes (PyTorch (out,in) layout)."""
    ks = jax.random.split(key, 6)

    def linear(kw, kb, fan_in, fan_out):
        bound = 1.0 / jnp.sqrt(fan_in)
        w = jax.random.uniform(kw, (fan_out, fan_in), jnp.float32, -bound, bound)
        b = jax.random.uniform(kb, (fan_out, 1), jnp.float32, -bound, bound)
        return w, b

    w1, b1 = linear(ks[0], ks[1], 9, 16)
    w2, b2 = linear(ks[2], ks[3], 16, 16)
    w3, b3 = linear(ks[4], ks[5], 16, 9)
    return dict(w1=w1, b1=b1, w2=w2, b2=b2, w3=w3, b3=b3)


def reference_forward(x, p):
    h = x
    for w, b in ((p["w1"], p["b1"]), (p["w2"], p["b2"]), (p["w3"], p["b3"])):
        h = jnp.maximum(h @ w.T + b[:, 0], 0.0)
    return jax.nn.softmax(h, axis=1)


# TODO(synk): ANN_Model.move() (masking invalid board moves + argmax) is host-side
# game logic, not part of the nn.Module forward pass, so it is not kernelized.

if __name__ == "__main__":
    key = jax.random.PRNGKey(0)
    k_params, k_x = jax.random.split(key)

    params = init_params(k_params)
    x = jax.random.normal(k_x, (8, 9), dtype=jnp.float32)  # batch=8, 9 board cells

    out = jax.block_until_ready(ann_forward(x, params))
    ref = jax.block_until_ready(reference_forward(x, params))

    assert out.shape == (8, 9)
    # Exact divide in the kernel -> rows sum to 1 to f32 precision.
    assert jnp.allclose(jnp.sum(out, axis=1), 1.0, atol=1e-4)
    assert jnp.allclose(out, ref, atol=1e-3)
    print("KERNEL_OK")
</pallas_src>

<mosaic_0001>
module attributes {stable_mosaic.version = 11 : i64} {
  func.func @ann_kernel(%arg0: i32, %arg1: memref<9x128xf32, #tpu.memory_space<vmem>>, %arg2: memref<16x9xf32, #tpu.memory_space<vmem>>, %arg3: memref<16x1xf32, #tpu.memory_space<vmem>>, %arg4: memref<16x16xf32, #tpu.memory_space<vmem>>, %arg5: memref<16x1xf32, #tpu.memory_space<vmem>>, %arg6: memref<9x16xf32, #tpu.memory_space<vmem>>, %arg7: memref<9x1xf32, #tpu.memory_space<vmem>>, %arg8: memref<9x128xf32, #tpu.memory_space<vmem>>) attributes {dimension_semantics = [#tpu.dimension_semantics<parallel>], iteration_bounds = array<i64: 1>, scalar_prefetch = 0 : i64, scratch_operands = 0 : i64, tpu.core_type = #tpu.core_type<tc>, window_params = [{transform_indices = @transform_0, window_bounds = array<i64: 9, 128>}, {pipeline_mode = #tpu.pipeline_mode<synchronous>, transform_indices = @transform_1, window_bounds = array<i64: 16, 9>}, {pipeline_mode = #tpu.pipeline_mode<synchronous>, transform_indices = @transform_2, window_bounds = array<i64: 16, 1>}, {pipeline_mode = #tpu.pipeline_mode<synchronous>, transform_indices = @transform_3, window_bounds = array<i64: 16, 16>}, {pipeline_mode = #tpu.pipeline_mode<synchronous>, transform_indices = @transform_4, window_bounds = array<i64: 16, 1>}, {pipeline_mode = #tpu.pipeline_mode<synchronous>, transform_indices = @transform_5, window_bounds = array<i64: 9, 16>}, {pipeline_mode = #tpu.pipeline_mode<synchronous>, transform_indices = @transform_6, window_bounds = array<i64: 9, 1>}, {transform_indices = @transform_7, window_bounds = array<i64: 9, 128>}]} {
    %c0 = arith.constant 0 : index
    %c0_0 = arith.constant 0 : index
    %0 = vector.load %arg2[%c0, %c0_0] : memref<16x9xf32, #tpu.memory_space<vmem>>, vector<16x9xf32>
    %c0_1 = arith.constant 0 : index
    %c0_2 = arith.constant 0 : index
    %1 = vector.load %arg3[%c0_1, %c0_2] : memref<16x1xf32, #tpu.memory_space<vmem>>, vector<16x1xf32>
    %c0_3 = arith.constant 0 : index
    %c0_4 = arith.constant 0 : index
    %2 = vector.load %arg4[%c0_3, %c0_4] : memref<16x16xf32, #tpu.memory_space<vmem>>, vector<16x16xf32>
    %c0_5 = arith.constant 0 : index
    %c0_6 = arith.constant 0 : index
    %3 = vector.load %arg5[%c0_5, %c0_6] : memref<16x1xf32, #tpu.memory_space<vmem>>, vector<16x1xf32>
    %c0_7 = arith.constant 0 : index
    %c0_8 = arith.constant 0 : index
    %4 = vector.load %arg6[%c0_7, %c0_8] : memref<9x16xf32, #tpu.memory_space<vmem>>, vector<9x16xf32>
    %c0_9 = arith.constant 0 : index
    %c0_10 = arith.constant 0 : index
    %5 = vector.load %arg7[%c0_9, %c0_10] : memref<9x1xf32, #tpu.memory_space<vmem>>, vector<9x1xf32>
    %c0_11 = arith.constant 0 : index
    %c0_12 = arith.constant 0 : index
    %6 = vector.load %arg1[%c0_11, %c0_12] : memref<9x128xf32, #tpu.memory_space<vmem>>, vector<9x128xf32>
    %cst = arith.constant dense<0.000000e+00> : vector<16x128xf32>
    %7 = tpu.matmul %0, %6, %cst {dimension_numbers = #tpu.dot_dimension_numbers<[1], [0], [0], [1], [0, 0, 1, 1], [], []>} : vector<16x9xf32>, vector<9x128xf32>, vector<16x128xf32> -> vector<16x128xf32>
    %8 = vector.broadcast %1 : vector<16x1xf32> to vector<16x128xf32>
    %9 = arith.addf %7, %8 : vector<16x128xf32>
    %cst_13 = arith.constant 0.000000e+00 : f32
    %10 = vector.broadcast %cst_13 : f32 to vector<16x128xf32>
    %11 = arith.maximumf %9, %10 : vector<16x128xf32>
    %cst_14 = arith.constant dense<0.000000e+00> : vector<16x128xf32>
    %12 = tpu.matmul %2, %11, %cst_14 {dimension_numbers = #tpu.dot_dimension_numbers<[1], [0], [0], [1], [0, 0, 1, 1], [], []>} : vector<16x16xf32>, vector<16x128xf32>, vector<16x128xf32> -> vector<16x128xf32>
    %13 = vector.broadcast %3 : vector<16x1xf32> to vector<16x128xf32>
    %14 = arith.addf %12, %13 : vector<16x128xf32>
    %cst_15 = arith.constant 0.000000e+00 : f32
    %15 = vector.broadcast %cst_15 : f32 to vector<16x128xf32>
    %16 = arith.maximumf %14, %15 : vector<16x128xf32>
    %cst_16 = arith.constant dense<0.000000e+00> : vector<9x128xf32>
    %17 = tpu.matmul %4, %16, %cst_16 {dimension_numbers = #tpu.dot_dimension_numbers<[1], [0], [0], [1], [0, 0, 1, 1], [], []>} : vector<9x16xf32>, vector<16x128xf32>, vector<9x128xf32> -> vector<9x128xf32>
    %18 = vector.broadcast %5 : vector<9x1xf32> to vector<9x128xf32>
    %19 = arith.addf %17, %18 : vector<9x128xf32>
    %cst_17 = arith.constant 0.000000e+00 : f32
    %20 = vector.broadcast %cst_17 : f32 to vector<9x128xf32>
    %21 = arith.maximumf %19, %20 : vector<9x128xf32>
    %cst_18 = arith.constant dense<0xFF800000> : vector<128xf32>
    %22 = vector.multi_reduction <maximumf>, %21, %cst_18 [0] : vector<9x128xf32> to vector<128xf32>
    %23 = vector.shape_cast %22 : vector<128xf32> to vector<1x128xf32>
    %24 = vector.broadcast %23 : vector<1x128xf32> to vector<9x128xf32>
    %25 = arith.subf %21, %24 : vector<9x128xf32>
    %26 = math.exp %25 : vector<9x128xf32>
    %cst_19 = arith.constant dense<0.000000e+00> : vector<128xf32>
    %27 = vector.multi_reduction <add>, %26, %cst_19 [0] : vector<9x128xf32> to vector<128xf32>
    %28 = vector.shape_cast %27 : vector<128xf32> to vector<1x128xf32>
    %29 = vector.broadcast %28 : vector<1x128xf32> to vector<9x128xf32>
    %30 = arith.divf %26, %29 : vector<9x128xf32>
    %c0_20 = arith.constant 0 : index
    %c0_21 = arith.constant 0 : index
    %31 = vector.load %arg8[%c0_20, %c0_21] : memref<9x128xf32, #tpu.memory_space<vmem>>, vector<9x128xf32>
    tpu.vector_store %arg8[%c0_20, %c0_21], %30 {strides = array<i32>} : memref<9x128xf32, #tpu.memory_space<vmem>>, vector<9x128xf32>,
    return
  }
  func.func @transform_0(%arg0: i32) -> (i32, i32) {
    %c0_i32 = arith.constant 0 : i32
    %c0_i32_0 = arith.constant 0 : i32
    return %c0_i32, %arg0 : i32, i32
  }
  func.func @transform_1(%arg0: i32) -> (i32, i32) {
    %c0_i32 = arith.constant 0 : i32
    %c0_i32_0 = arith.constant 0 : i32
    %c0_i32_1 = arith.constant 0 : i32
    return %c0_i32, %c0_i32_0 : i32, i32
  }
  func.func @transform_2(%arg0: i32) -> (i32, i32) {
    %c0_i32 = arith.constant 0 : i32
    %c0_i32_0 = arith.constant 0 : i32
    %c0_i32_1 = arith.constant 0 : i32
    return %c0_i32, %c0_i32_0 : i32, i32
  }
  func.func @transform_3(%arg0: i32) -> (i32, i32) {
    %c0_i32 = arith.constant 0 : i32
    %c0_i32_0 = arith.constant 0 : i32
    %c0_i32_1 = arith.constant 0 : i32
    return %c0_i32, %c0_i32_0 : i32, i32
  }
  func.func @transform_4(%arg0: i32) -> (i32, i32) {
    %c0_i32 = arith.constant 0 : i32
    %c0_i32_0 = arith.constant 0 : i32
    %c0_i32_1 = arith.constant 0 : i32
    return %c0_i32, %c0_i32_0 : i32, i32
  }
  func.func @transform_5(%arg0: i32) -> (i32, i32) {
    %c0_i32 = arith.constant 0 : i32
    %c0_i32_0 = arith.constant 0 : i32
    %c0_i32_1 = arith.constant 0 : i32
    return %c0_i32, %c0_i32_0 : i32, i32
  }
  func.func @transform_6(%arg0: i32) -> (i32, i32) {
    %c0_i32 = arith.constant 0 : i32
    %c0_i32_0 = arith.constant 0 : i32
    %c0_i32_1 = arith.constant 0 : i32
    return %c0_i32, %c0_i32_0 : i32, i32
  }
  func.func @transform_7(%arg0: i32) -> (i32, i32) {
    %c0_i32 = arith.constant 0 : i32
    %c0_i32_0 = arith.constant 0 : i32
    return %c0_i32, %arg0 : i32, i32
  }
}

</mosaic_0001>

<llo_original>
// kernel: tpu_custom_call.1
$region0: #{tpu_custom_call.1}
  #allocation0 [shape = 'u32[]', space=smem, size = 0x4, offset = 0x4, fixed_abs, tag = 'smem constant byte address 0x4 - core index']
  #allocation1 [shape = 'u32[144,128]{1,0:T(1,128)}', space=vmem, size = 0x12000, scoped, tag = 'internal scratch']
  %s0 = inlined_call_operand.vmem [shape: f32[9,128], index: 0, kind: input, shape index: {}]
  %s1 = inlined_call_operand.vmem [shape: f32[16,9], index: 1, kind: input, shape index: {}]
  %s2 = inlined_call_operand.vmem [shape: f32[16,1], index: 2, kind: input, shape index: {}]
  %s3 = inlined_call_operand.vmem [shape: f32[16,16], index: 3, kind: input, shape index: {}]
  %s4 = inlined_call_operand.vmem [shape: f32[16,1], index: 4, kind: input, shape index: {}]
  %s5 = inlined_call_operand.vmem [shape: f32[9,16], index: 5, kind: input, shape index: {}]
  %s6 = inlined_call_operand.vmem [shape: f32[9,1], index: 6, kind: input, shape index: {}]
  %s7 = inlined_call_operand.hbm [shape: f32[9,128], index: 7, kind: output, shape index: {}]
  %s8 = sld [smem:[#allocation0]]
  $region38: #{tpu_custom_call.1} parent=0
    _
  %s10 = ssub.s32 1, %s8
  %s11 = scalar_select 0, %s10, %s8
  $region1: #{tpu_custom_call.1} parent=0
    #allocation2 [shape = 'u8[8192]{0}', space=vmem, size = 0x2000, scoped, tag = 'output window, operand 0, single buffered']
    #allocation3 [shape = 's32[1]{0}', space=sflag, size = 0x4, scoped, tag = 'scoped memory for tpu_custom_call.1']
    %12 = vsyncpa [#allocation3], 0
    // Predicated region
    $region2: #{tpu_custom_call.1} parent=1 // pred_check
      _
    $region3: #{tpu_custom_call.1} parent=1 // pred_check_branch
      %14 = sbr.rel (0) target = $region5
    $region4: #{tpu_custom_call.1} parent=1 // pred_region
      _
    $region5: #{tpu_custom_call.1} parent=1 // pred_fallthru
      _
    // Predicated region
    $region6: #{tpu_custom_call.1} parent=1 // pred_check
      _
    $region7: #{tpu_custom_call.1} parent=1 // pred_check_branch
      %16 = sbr.rel (0) target = $region9
    $region8: #{tpu_custom_call.1} parent=1 // pred_region
      _
    $region9: #{tpu_custom_call.1} parent=1 // pred_fallthru
      _
    // Predicated region
    $region10: #{tpu_custom_call.1} parent=1 // pred_check
      _
    $region11: #{tpu_custom_call.1} parent=1 // pred_check_branch
      %18 = sbr.rel (0) target = $region13
    $region12: #{tpu_custom_call.1} parent=1 // pred_region
      _
    $region13: #{tpu_custom_call.1} parent=1 // pred_fallthru
      _
    // Predicated region
    $region14: #{tpu_custom_call.1} parent=1 // pred_check
      _
    $region15: #{tpu_custom_call.1} parent=1 // pred_check_branch
      %20 = sbr.rel (0) target = $region17
    $region16: #{tpu_custom_call.1} parent=1 // pred_region
      _
    $region17: #{tpu_custom_call.1} parent=1 // pred_fallthru
      _
    // Predicated region
    $region18: #{tpu_custom_call.1} parent=1 // pred_check
      _
    $region19: #{tpu_custom_call.1} parent=1 // pred_check_branch
      %22 = sbr.rel (0) target = $region21
    $region20: #{tpu_custom_call.1} parent=1 // pred_region
      _
    $region21: #{tpu_custom_call.1} parent=1 // pred_fallthru
      _
    // Predicated region
    $region22: #{tpu_custom_call.1} parent=1 // pred_check
      _
    $region23: #{tpu_custom_call.1} parent=1 // pred_check_branch
      %24 = sbr.rel (0) target = $region25
    $region24: #{tpu_custom_call.1} parent=1 // pred_region
      _
    $region25: #{tpu_custom_call.1} parent=1 // pred_fallthru
      _
    // Predicated region
    $region26: #{tpu_custom_call.1} parent=1 // pred_check
      _
    $region27: #{tpu_custom_call.1} parent=1 // pred_check_branch
      %26 = sbr.rel (0) target = $region29
    $region28: #{tpu_custom_call.1} parent=1 // pred_region
      _
    $region29: #{tpu_custom_call.1} parent=1 // pred_fallthru
      _
    %v27 = vld [vmem:[%s1] sm:$0xff]
    %v28 = vld [vmem:[%s1 + $0x8] sm:$0xff]
    %v29 = vld [vmem:[%s2] sm:$0xff]
    %v30 = vld [vmem:[%s2 + $0x8] sm:$0xff]
    %v31 = vld [vmem:[%s3] sm:$0xff]
    %v32 = vld [vmem:[%s3 + $0x8] sm:$0xff]
    %v33 = vld [vmem:[%s4] sm:$0xff]
    %v34 = vld [vmem:[%s4 + $0x8] sm:$0xff]
    %v35 = vld [vmem:[%s5] sm:$0xff]
    %v36 = vld [vmem:[%s5 + $0x8] sm:$0x1]
    %v37 = vld [vmem:[%s6] sm:$0xff]
    %v38 = vld [vmem:[%s6 + $0x8] sm:$0x1]
    %v39 = vld [vmem:[%s0] sm:$0xff]
    %v40 = vld [vmem:[%s0 + $0x8] sm:$0x1]
    %42 = vset.pattern.permute.xlu0 0
    %43 = vperm.xlu0 %42, %v29
    %v44 = vpop.permute.xlu0 %43
    %47 = vset.pattern.permute.xlu0 0
    %48 = vperm.xlu0 %47, %v30
    %v49 = vpop.permute.xlu0 %48
    %vm51 = vcmask 72704
    %v53 = vsel %vm51, %v27, 0
    %v56 = vsel %vm51, %v28, 0
    %vm58 = vcmask 1040384
    %v60 = vsel %vm58, %v40, 0
    %62 = vmatprep.subr.mxu0 0.0
    %63 = vmatpush1.msra.mxu0 %v39
    %64 = vmatprep.subr.mxu0 0.0
    %65 = vmatpush1.msra.mxu0 %v60
    %66 = vmatprep.subr.mxu0 0.0
    %67 = vmatpush1.msra.mxu0 0.0
    %68 = vmatprep.subr.mxu0 0.0
    %69 = vmatpush1.msra.mxu0 0.0
    %70 = vmatprep.subr.mxu0 0.0
    %71 = vmatpush1.msra.mxu0 0.0
    %72 = vmatprep.subr.mxu0 0.0
    %73 = vmatpush1.msra.mxu0 0.0
    %74 = vmatprep.subr.mxu0 0.0
    %75 = vmatpush1.msra.mxu0 0.0
    %76 = vmatprep.subr.mxu0 0.0
    %77 = vmatpush1.msra.mxu0 0.0
    %78 = vmatprep.subr.mxu0 0.0
    %79 = vmatpush1.msra.mxu0 0.0
    %80 = vmatprep.subr.mxu0 0.0
    %81 = vmatpush1.msra.mxu0 0.0
    %82 = vmatprep.subr.mxu0 0.0
    %83 = vmatpush1.msra.mxu0 0.0
    %84 = vmatprep.subr.mxu0 0.0
    %85 = vmatpush1.msra.mxu0 0.0
    %86 = vmatprep.subr.mxu0 0.0
    %87 = vmatpush1.msra.mxu0 0.0
    %88 = vmatprep.subr.mxu0 0.0
    %89 = vmatpush1.msra.mxu0 0.0
    %90 = vmatprep.subr.mxu0 0.0
    %91 = vmatpush1.msra.mxu0 0.0
    %92 = vmatprep.subr.mxu0 0.0
    %93 = vmatpush1.msra.mxu0 0.0
    %94 = vmatprep.subr.mxu0 0.0
    %95 = vmatpush1.msra.mxu0 0.0
    %96 = vmatprep.subr.mxu0 0.0
    %97 = vmatpush1.msra.mxu0 0.0
    %98 = vmatprep.subr.mxu0 0.0
    %99 = vmatpush1.msra.mxu0 0.0
    %100 = vmatprep.subr.mxu0 0.0
    %101 = vmatpush1.msra.mxu0 0.0
    %102 = vmatprep.subr.mxu0 0.0
    %103 = vmatpush1.msra.mxu0 0.0
    %104 = vmatprep.subr.mxu0 0.0
    %105 = vmatpush1.msra.mxu0 0.0
    %106 = vmatprep.subr.mxu0 0.0
    %107 = vmatpush1.msra.mxu0 0.0
    %108 = vmatprep.subr.mxu0 0.0
    %109 = vmatpush1.msra.mxu0 0.0
    %110 = vmatprep.subr.mxu0 0.0
    %111 = vmatpush1.msra.mxu0 0.0
    %112 = vmatprep.subr.mxu0 0.0
    %113 = vmatpush1.msra.mxu0 0.0
    %114 = vmatprep.subr.mxu0 0.0
    %115 = vmatpush1.msra.mxu0 0.0
    %116 = vmatprep.subr.mxu0 0.0
    %117 = vmatpush1.msra.mxu0 0.0
    %118 = vmatprep.subr.mxu0 0.0
    %119 = vmatpush1.msra.mxu0 0.0
    %120 = vmatprep.subr.mxu0 0.0
    %121 = vmatpush1.msra.mxu0 0.0
    %122 = vmatprep.subr.mxu0 0.0
    %123 = vmatpush1.msra.mxu0 0.0
    %124 = vmatprep.subr.mxu0 0.0
    %125 = vmatpush1.msra.mxu0 0.0
    %126 = vmatprep.mubr.f32.mxu0 0.0
    %127 = vmatmul.mubr.f32.gmra.mrb[0].mxu0 %v53
    %v128 = vpop.f32.mrb[0].mxu0
    %v129 = vadd.f32 %v44, %v128
    %v130 = vpop.f32.mrb[0].mxu0
    %131 = vmatprep.mubr.f32.mxu0 0.0
    %132 = vmatmul.mubr.f32.gmra.mrb[0].mxu0 %v56
    %v133 = vpop.f32.mrb[0].mxu0
    %v134 = vadd.f32 %v49, %v133
    %v135 = vpop.f32.mrb[0].mxu0
    %136 = vdwg.mxu0
    %v137 = vmax.f32 %v129, 0.0
    %v138 = vmax.f32 %v134, 0.0
    %140 = vset.pattern.permute.xlu0 0
    %141 = vperm.xlu0 %140, %v33
    %v142 = vpop.permute.xlu0 %141
    %145 = vset.pattern.permute.xlu0 0
    %146 = vperm.xlu0 %145, %v34
    %v147 = vpop.permute.xlu0 %146
    %vm149 = vcmask 130048
    %v151 = vsel %vm149, %v31, 0
    %v154 = vsel %vm149, %v32, 0
    %156 = vmatprep.subr.mxu0 0.0
    %157 = vmatpush1.msra.mxu0 %v137
    %158 = vmatprep.subr.mxu0 0.0
    %159 = vmatpush1.msra.mxu0 %v138
    %160 = vmatprep.subr.mxu0 0.0
    %161 = vmatpush1.msra.mxu0 0.0
    %162 = vmatprep.subr.mxu0 0.0
    %163 = vmatpush1.msra.mxu0 0.0
    %164 = vmatprep.subr.mxu0 0.0
    %165 = vmatpush1.msra.mxu0 0.0
    %166 = vmatprep.subr.mxu0 0.0
    %167 = vmatpush1.msra.mxu0 0.0
    %168 = vmatprep.subr.mxu0 0.0
    %169 = vmatpush1.msra.mxu0 0.0
    %170 = vmatprep.subr.mxu0 0.0
    %171 = vmatpush1.msra.mxu0 0.0
    %172 = vmatprep.subr.mxu0 0.0
    %173 = vmatpush1.msra.mxu0 0.0
    %174 = vmatprep.subr.mxu0 0.0
    %175 = vmatpush1.msra.mxu0 0.0
    %176 = vmatprep.subr.mxu0 0.0
    %177 = vmatpush1.msra.mxu0 0.0
    %178 = vmatprep.subr.mxu0 0.0
    %179 = vmatpush1.msra.mxu0 0.0
    %180 = vmatprep.subr.mxu0 0.0
    %181 = vmatpush1.msra.mxu0 0.0
    %182 = vmatprep.subr.mxu0 0.0
    %183 = vmatpush1.msra.mxu0 0.0
    %184 = vmatprep.subr.mxu0 0.0
    %185 = vmatpush1.msra.mxu0 0.0
    %186 = vmatprep.subr.mxu0 0.0
    %187 = vmatpush1.msra.mxu0 0.0
    %188 = vmatprep.subr.mxu0 0.0
    %189 = vmatpush1.msra.mxu0 0.0
    %190 = vmatprep.subr.mxu0 0.0
    %191 = vmatpush1.msra.mxu0 0.0
    %192 = vmatprep.subr.mxu0 0.0
    %193 = vmatpush1.msra.mxu0 0.0
    %194 = vmatprep.subr.mxu0 0.0
    %195 = vmatpush1.msra.mxu0 0.0
    %196 = vmatprep.subr.mxu0 0.0
    %197 = vmatpush1.msra.mxu0 0.0
    %198 = vmatprep.subr.mxu0 0.0
    %199 = vmatpush1.msra.mxu0 0.0
    %200 = vmatprep.subr.mxu0 0.0
    %201 = vmatpush1.msra.mxu0 0.0
    %202 = vmatprep.subr.mxu0 0.0
    %203 = vmatpush1.msra.mxu0 0.0
    %204 = vmatprep.subr.mxu0 0.0
    %205 = vmatpush1.msra.mxu0 0.0
    %206 = vmatprep.subr.mxu0 0.0
    %207 = vmatpush1.msra.mxu0 0.0
    %208 = vmatprep.subr.mxu0 0.0
    %209 = vmatpush1.msra.mxu0 0.0
    %210 = vmatprep.subr.mxu0 0.0
    %211 = vmatpush1.msra.mxu0 0.0
    %212 = vmatprep.subr.mxu0 0.0
    %213 = vmatpush1.msra.mxu0 0.0
    %214 = vmatprep.subr.mxu0 0.0
    %215 = vmatpush1.msra.mxu0 0.0
    %216 = vmatprep.subr.mxu0 0.0
    %217 = vmatpush1.msra.mxu0 0.0
    %218 = vmatprep.subr.mxu0 0.0
    %219 = vmatpush1.msra.mxu0 0.0
    %220 = vmatprep.mubr.f32.mxu0 0.0
    %221 = vmatmul.mubr.f32.gmra.mrb[0].mxu0 %v151
    %v222 = vpop.f32.mrb[0].mxu0
    %v223 = vadd.f32 %v142, %v222
    %v224 = vpop.f32.mrb[0].mxu0
    %225 = vmatprep.mubr.f32.mxu0 0.0
    %226 = vmatmul.mubr.f32.gmra.mrb[0].mxu0 %v154
    %v227 = vpop.f32.mrb[0].mxu0
    %v228 = vadd.f32 %v147, %v227
    %v229 = vpop.f32.mrb[0].mxu0
    %230 = vdwg.mxu0
    %v231 = vmax.f32 %v223, 0.0
    %v232 = vmax.f32 %v228, 0.0
    %234 = vset.pattern.permute.xlu0 0
    %235 = vperm.xlu0 %234, %v37
    %v236 = vpop.permute.xlu0 %235
    %239 = vset.pattern.permute.xlu0 0
    %240 = vperm.xlu0 %239, %v38
    %v241 = vpop.permute.xlu0 %240
    %v244 = vsel %vm149, %v35, 0
    %v247 = vsel %vm149, %v36, 0
    %249 = vmatprep.subr.mxu0 0.0
    %250 = vmatpush1.msra.mxu0 %v231
    %251 = vmatprep.subr.mxu0 0.0
    %252 = vmatpush1.msra.mxu0 %v232
    %253 = vmatprep.subr.mxu0 0.0
    %254 = vmatpush1.msra.mxu0 0.0
    %255 = vmatprep.subr.mxu0 0.0
    %256 = vmatpush1.msra.mxu0 0.0
    %257 = vmatprep.subr.mxu0 0.0
    %258 = vmatpush1.msra.mxu0 0.0
    %259 = vmatprep.subr.mxu0 0.0
    %260 = vmatpush1.msra.mxu0 0.0
    %261 = vmatprep.subr.mxu0 0.0
    %262 = vmatpush1.msra.mxu0 0.0
    %263 = vmatprep.subr.mxu0 0.0
    %264 = vmatpush1.msra.mxu0 0.0
    %265 = vmatprep.subr.mxu0 0.0
    %266 = vmatpush1.msra.mxu0 0.0
    %267 = vmatprep.subr.mxu0 0.0
    %268 = vmatpush1.msra.mxu0 0.0
    %269 = vmatprep.subr.mxu0 0.0
    %270 = vmatpush1.msra.mxu0 0.0
    %271 = vmatprep.subr.mxu0 0.0
    %272 = vmatpush1.msra.mxu0 0.0
    %273 = vmatprep.subr.mxu0 0.0
    %274 = vmatpush1.msra.mxu0 0.0
    %275 = vmatprep.subr.mxu0 0.0
    %276 = vmatpush1.msra.mxu0 0.0
    %277 = vmatprep.subr.mxu0 0.0
    %278 = vmatpush1.msra.mxu0 0.0
    %279 = vmatprep.subr.mxu0 0.0
    %280 = vmatpush1.msra.mxu0 0.0
    %281 = vmatprep.subr.mxu0 0.0
    %282 = vmatpush1.msra.mxu0 0.0
    %283 = vmatprep.subr.mxu0 0.0
    %284 = vmatpush1.msra.mxu0 0.0
    %285 = vmatprep.subr.mxu0 0.0
    %286 = vmatpush1.msra.mxu0 0.0
    %287 = vmatprep.subr.mxu0 0.0
    %288 = vmatpush1.msra.mxu0 0.0
    %289 = vmatprep.subr.mxu0 0.0
    %290 = vmatpush1.msra.mxu0 0.0
    %291 = vmatprep.subr.mxu0 0.0
    %292 = vmatpush1.msra.mxu0 0.0
    %293 = vmatprep.subr.mxu0 0.0
    %294 = vmatpush1.msra.mxu0 0.0
    %295 = vmatprep.subr.mxu0 0.0
    %296 = vmatpush1.msra.mxu0 0.0
    %297 = vmatprep.subr.mxu0 0.0
    %298 = vmatpush1.msra.mxu0 0.0
    %299 = vmatprep.subr.mxu0 0.0
    %300 = vmatpush1.msra.mxu0 0.0
    %301 = vmatprep.subr.mxu0 0.0
    %302 = vmatpush1.msra.mxu0 0.0
    %303 = vmatprep.subr.mxu0 0.0
    %304 = vmatpush1.msra.mxu0 0.0
    %305 = vmatprep.subr.mxu0 0.0
    %306 = vmatpush1.msra.mxu0 0.0
    %307 = vmatprep.subr.mxu0 0.0
    %308 = vmatpush1.msra.mxu0 0.0
    %309 = vmatprep.subr.mxu0 0.0
    %310 = vmatpush1.msra.mxu0 0.0
    %311 = vmatprep.subr.mxu0 0.0
    %312 = vmatpush1.msra.mxu0 0.0
    %313 = vmatprep.mubr.f32.mxu0 0.0
    %314 = vmatmul.mubr.f32.gmra.mrb[0].mxu0 %v244
    %v315 = vpop.f32.mrb[0].mxu0
    %v316 = vadd.f32 %v236, %v315
    %v317 = vpop.f32.mrb[0].mxu0
    %318 = vmatprep.mubr.f32.mxu0 0.0
    %319 = vmatmul.mubr.f32.gmra.mrb[0].mxu0 %v247
    %v320 = vpop.f32.mrb[0].mxu0
    %v321 = vadd.f32 %v241, %v320
    %v322 = vpop.f32.mrb[0].mxu0
    %323 = vdwg.mxu0
    %v324 = vmax.f32 %v316, 0.0
    %v325 = vmax.f32 %v321, 0.0
    %v326 = vsel %vm58, %v325, -inf
    %v327 = vmax.f32 %v324, %v326
    %v328 = vrot.slane %v327, 4
    %v329 = vmax.f32 %v327, %v328
    %v330 = vrot.slane %v329, 2
    %v331 = vmax.f32 %v329, %v330
    %v332 = vrot.slane %v331, 1
    %v333 = vmax.f32 %v331, %v332
    %v334 = vsub.f32 %v324, %v333
    %v335 = vsub.f32 %v325, %v333
    %v336 = vmul.f32 %v334, 1.442695
    %v337 = vpow.pop %v336
    %v338 = vmul.f32 %v335, 1.442695
    %v339 = vpow.pop %v338
    %v340 = vsel %vm58, %v339, 0.0
    %v341 = vadd.f32 %v337, %v340
    %v342 = vrot.slane %v341, 4
    %v343 = vadd.f32 %v341, %v342
    %v344 = vrot.slane %v343, 2
    %v345 = vadd.f32 %v343, %v344
    %v346 = vrot.slane %v345, 1
    %v347 = vadd.f32 %v345, %v346
    %v348 = vrcp.pop %v347
    %v349 = vmul.f32 %v337, %v348
    %v350 = vmul.f32 %v339, %v348
    %351 = vst [vmem:[#allocation2] sm:$0xff] %v349
    %352 = vst [vmem:[#allocation2 + $0x8] sm:$0x1] %v350
    // Predicated region
    $region30: #{tpu_custom_call.1} parent=1 // pred_check
      _
    $region31: #{tpu_custom_call.1} parent=1 // pred_check_branch
      %354 = sbr.rel (0) target = $region33
    $region32: #{tpu_custom_call.1} parent=1 // pred_region
      %s356 = ssub.s32 256, 256
      %357 = vsyncadd [#allocation3], %s356
      %s358 = sshll.u32 [#allocation2], 4
      %s359 = int_to_ptr.vmem [resolvable:$true] %s358
      %364 = dma.vmem_to_hbm [thread:$0]  %s359, 256, %s7, [#allocation3], 128, 128, 8
    $region33: #{tpu_custom_call.1} parent=1 // pred_fallthru
      _
    // Predicated region
    $region34: #{tpu_custom_call.1} parent=1 // pred_check
      _
    $region35: #{tpu_custom_call.1} parent=1 // pred_check_branch
      %366 = sbr.rel (0) target = $region37
    $region36: #{tpu_custom_call.1} parent=1 // pred_region
      %367 = dma.done [#allocation3], 256
    $region37: #{tpu_custom_call.1} parent=1 // pred_fallthru
      _
    %368 = vsyncpa [#allocation3], 1

</llo_original>
